<compile_context>
chip_gen: v7x
topology: tpu7x:2x2x1
jax: 0.10.0
libtpu: 0.0.40
codegen_flags: <defaults>
</compile_context>

<pallas_src>
import functools

import jax
import jax.numpy as jnp
from jax.experimental import pallas as pl
from jax.experimental.pallas import tpu as pltpu

EPS_MSG = 1e-7                        # GENConv message eps
EPS_LN = 1e-5                         # LayerNorm eps (PyTorch default)
HID = 32                              # GENConv hidden width
HID2 = 64                             # GENConv MLP expansion width / packed-msg width
NODE_TILE = 512                       # per-node kernel row tile (also n_pad granularity)
MSG_RESIDENT_BYTES = 8 * 1024 * 1024  # keep packed messages VMEM-resident below this


def _round_up(n, m):
    return ((n + m - 1) // m) * m


# ----------------------------- in-kernel helpers -----------------------------

def _layer_norm(h, gamma, beta):
    mu = jnp.mean(h, axis=-1, keepdims=True)
    var = jnp.mean((h - mu) ** 2, axis=-1, keepdims=True)
    return (h - mu) * jax.lax.rsqrt(var + EPS_LN) * gamma + beta


def _split_agg(agg):
    """agg = [sum(e*m) | sum(e)] -> softmax-weighted mean (0 for isolated nodes)."""
    num = agg[:, :HID]
    den = agg[:, HID:]
    den_safe = jnp.where(den > 0.0, den, 1.0)
    return jnp.where(den > 0.0, num / den_safe, 0.0)


def _gen_mlp(h, w1, b1, g, be, w2, b2):
    """GENConv MLP: Lin(32->64) -> LayerNorm -> ReLU -> Lin(64->32)."""
    h = jnp.dot(h, w1, preferred_element_type=jnp.float32) + b1
    h = jnp.maximum(_layer_norm(h, g, be), 0.0)
    return jnp.dot(h, w2, preferred_element_type=jnp.float32) + b2


# --------------------------------- kernels -----------------------------------

def encode_kernel(x_ref, w_ref, b_ref, x32_ref):
    """Node encoder: x @ W_enc + b_enc (per node tile)."""
    x32_ref[...] = (jnp.dot(x_ref[...], w_ref[...],
                            preferred_element_type=jnp.float32) + b_ref[...])


def msg_kernel(feat_ref, t_ref, shift_ref, msg_ref):
    """Packed bf16 softmax messages [e*m | e] with exact (cancelling) channel shift."""
    m = jnp.maximum(feat_ref[...], 0.0) + EPS_MSG
    e = jnp.exp(t_ref[...] * m - shift_ref[...])
    msg_ref[...] = jnp.concatenate([e * m, e], axis=-1).astype(jnp.bfloat16)


def agg_mid_kernel(adj_ref, msg_ref, x32_ref,
                   w1_ref, b1_ref, g_ref, be_ref, w2_ref, b2_ref,
                   lng_ref, lnb_ref,
                   x1h_ref, acc_ref, *, msg_resident):
    """Tiled aggregation 0 (int8 adj -> bf16 MXU, f32 acc) with fused epilogue:
    conv0 MLP + layer-1 res+ prologue (LN -> ReLU), packed lane-dense [x1 | h] output."""
    k = pl.program_id(1)

    @pl.when(k == 0)
    def _init():
        acc_ref[...] = jnp.zeros_like(acc_ref)

    msg_blk = msg_ref[k] if msg_resident else msg_ref[0]
    acc_ref[...] += jnp.dot(adj_ref[...].astype(jnp.bfloat16), msg_blk,
                            preferred_element_type=jnp.float32)

    @pl.when(k == pl.num_programs(1) - 1)
    def _epilogue():
        agg = _split_agg(acc_ref[...])
        x1 = _gen_mlp(agg + x32_ref[...],
                      w1_ref[...], b1_ref[...], g_ref[...], be_ref[...],
                      w2_ref[...], b2_ref[...])
        h = jnp.maximum(_layer_norm(x1, lng_ref[...], lnb_ref[...]), 0.0)
        x1h_ref[...] = jnp.concatenate([x1, h], axis=-1)


def agg_post_kernel(adj_ref, msg_ref, x1h_ref,
                    w1_ref, b1_ref, g_ref, be_ref, w2_ref, b2_ref,
                    lng_ref, lnb_ref, wo_ref, bo_ref,
                    out_ref, acc_ref, *, msg_resident):
    """Tiled aggregation 1 with fused epilogue: conv1 MLP + res+ residual +
    final LN/ReLU + output Linear (lane-dense, c_out padded to 128)."""
    k = pl.program_id(1)

    @pl.when(k == 0)
    def _init():
        acc_ref[...] = jnp.zeros_like(acc_ref)

    msg_blk = msg_ref[k] if msg_resident else msg_ref[0]
    acc_ref[...] += jnp.dot(adj_ref[...].astype(jnp.bfloat16), msg_blk,
                            preferred_element_type=jnp.float32)

    @pl.when(k == pl.num_programs(1) - 1)
    def _epilogue():
        agg = _split_agg(acc_ref[...])
        x1h = x1h_ref[...]
        x1 = x1h[:, :HID]
        h = x1h[:, HID:]
        x2 = x1 + _gen_mlp(agg + h,
                           w1_ref[...], b1_ref[...], g_ref[...], be_ref[...],
                           w2_ref[...], b2_ref[...])
        y = jnp.maximum(_layer_norm(x2, lng_ref[...], lnb_ref[...]), 0.0)
        out_ref[...] = (jnp.dot(y, wo_ref[...], preferred_element_type=jnp.float32)
                        + bo_ref[...])


# --------------------------------- wrappers ----------------------------------

def _messages(feat, t_row, shift_row, n_pad):
    """Per-node packed bf16 messages (tiny elementwise pass)."""
    grid = (n_pad // NODE_TILE,)
    return pl.pallas_call(
        msg_kernel,
        grid=grid,
        in_specs=[pl.BlockSpec((NODE_TILE, HID), lambda i: (i, 0)),
                  pl.BlockSpec((1, HID), lambda i: (0, 0)),
                  pl.BlockSpec((1, HID), lambda i: (0, 0))],
        out_specs=pl.BlockSpec((NODE_TILE, HID2), lambda i: (i, 0)),
        out_shape=jax.ShapeDtypeStruct((n_pad, HID2), jnp.bfloat16),
        compiler_params=pltpu.CompilerParams(dimension_semantics=("parallel",)),
    )(feat, t_row, shift_row)


def deepgcn_forward(x, edge_index, params, num_nodes):
    p = params
    n, c_in = x.shape
    c_out = p["w_out"].shape[1]
    c_out_pad = _round_up(c_out, 128)

    n_pad = _round_up(max(num_nodes, 1), NODE_TILE)
    tile_src = 512                               # reduction tile: multiple of 256 (MXU depth)
    tile_dst = 256 if n_pad <= 512 else 512      # >= 2 dst tiles -> megacore sharding
    n_dst = n_pad // tile_dst
    n_src = n_pad // tile_src

    # Dense adjacency A[dst, src] built DIRECTLY as int8 (no f32 temp); upcast to bf16
    # inside the aggregation kernels.  Assumes 0 <= edge_index < num_nodes and per-edge
    # multiplicity <= 127.
    e_src = edge_index[0]
    e_dst = edge_index[1]
    adj = jnp.zeros((n_pad, n_pad), jnp.int8).at[e_dst, e_src].add(
        jnp.ones(e_src.shape, jnp.int8))

    x_pad = jnp.zeros((n_pad, c_in), jnp.float32).at[:n, :].set(x.astype(jnp.float32))

    # learned temperatures broadcast to (1, 32) rows so they ride the bias path
    t0_row = jnp.broadcast_to(p["t0"].reshape(1, 1), (1, HID)).astype(jnp.float32)
    t1_row = jnp.broadcast_to(p["t1"].reshape(1, 1), (1, HID)).astype(jnp.float32)

    # lane-dense output weights (c_out padded to 128, sliced off after the call)
    w_out_p = jnp.zeros((HID, c_out_pad), jnp.float32).at[:, :c_out].set(p["w_out"])
    b_out_p = jnp.zeros((1, c_out_pad), jnp.float32).at[:, :c_out].set(p["b_out"])

    # ---- per-node specs ----
    grid_nodes = (n_pad // NODE_TILE,)
    node = lambda w: pl.BlockSpec((NODE_TILE, w), lambda i: (i, 0))
    cst1 = lambda a: pl.BlockSpec(a.shape, lambda i: (0, 0))
    par1 = pltpu.CompilerParams(dimension_semantics=("parallel",))

    # 1) node encoder
    x32 = pl.pallas_call(
        encode_kernel,
        grid=grid_nodes,
        in_specs=[node(c_in), cst1(p["w_enc"]), cst1(p["b_enc"])],
        out_specs=node(HID),
        out_shape=jax.ShapeDtypeStruct((n_pad, HID), jnp.float32),
        compiler_params=par1,
    )(x_pad, p["w_enc"], p["b_enc"])

    # ---- shared aggregation specs (grid = dst tiles x src tiles, reduction last) ----
    msg_resident = (n_pad * HID2 * 2) <= MSG_RESIDENT_BYTES
    adj_spec = pl.BlockSpec((tile_dst, tile_src), lambda i, k: (i, k))
    if msg_resident:
        # whole packed-message matrix resident in VMEM (loaded once per core)
        msg_spec = pl.BlockSpec((n_src, tile_src, HID2), lambda i, k: (0, 0, 0))
    else:
        # streaming fallback for very large graphs (keeps v7x 64 MiB VMEM budget)
        msg_spec = pl.BlockSpec((1, tile_src, HID2), lambda i, k: (k, 0, 0))
    dst_spec = lambda w: pl.BlockSpec((tile_dst, w), lambda i, k: (i, 0))
    cst2 = lambda a: pl.BlockSpec(a.shape, lambda i, k: (0, 0))
    par2 = pltpu.CompilerParams(dimension_semantics=("parallel", "arbitrary"))
    agg_grid = (n_dst, n_src)
    acc_scratch = [pltpu.VMEM((tile_dst, HID2), jnp.float32)]

    # 2) exact per-channel softmax shift for layer 0 (cancels in num/den) + messages
    m0 = jnp.maximum(x32, 0.0) + EPS_MSG
    shift0 = jnp.max(t0_row * m0, axis=0, keepdims=True)
    msg0 = _messages(x32, t0_row, shift0, n_pad).reshape(n_src, tile_src, HID2)

    # 3) aggregation 0 + fused conv0 MLP + layer-1 res+ prologue (LN -> ReLU)
    x1h = pl.pallas_call(
        functools.partial(agg_mid_kernel, msg_resident=msg_resident),
        grid=agg_grid,
        in_specs=[adj_spec, msg_spec, dst_spec(HID),
                  cst2(p["w1_0"]), cst2(p["b1_0"]), cst2(p["g0"]), cst2(p["be0"]),
                  cst2(p["w2_0"]), cst2(p["b2_0"]),
                  cst2(p["ln1_g"]), cst2(p["ln1_b"])],
        out_specs=dst_spec(2 * HID),
        out_shape=jax.ShapeDtypeStruct((n_pad, 2 * HID), jnp.float32),
        scratch_shapes=acc_scratch,
        compiler_params=par2,
    )(adj, msg0, x32, p["w1_0"], p["b1_0"], p["g0"], p["be0"],
      p["w2_0"], p["b2_0"], p["ln1_g"], p["ln1_b"])

    # 4) layer-1 messages (h = x1h[:, 32:] is already >= 0 from the ReLU)
    h = x1h[:, HID:]
    shift1 = jnp.max(t1_row * (h + EPS_MSG), axis=0, keepdims=True)
    msg1 = _messages(h, t1_row, shift1, n_pad).reshape(n_src, tile_src, HID2)

    # 5) aggregation 1 + fused conv1 MLP + residual + final LN/ReLU + output Linear
    out_pad = pl.pallas_call(
        functools.partial(agg_post_kernel, msg_resident=msg_resident),
        grid=agg_grid,
        in_specs=[adj_spec, msg_spec, dst_spec(2 * HID),
                  cst2(p["w1_1"]), cst2(p["b1_1"]), cst2(p["g1"]), cst2(p["be1"]),
                  cst2(p["w2_1"]), cst2(p["b2_1"]),
                  cst2(p["ln0_g"]), cst2(p["ln0_b"]),
                  cst2(w_out_p), cst2(b_out_p)],
        out_specs=dst_spec(c_out_pad),
        out_shape=jax.ShapeDtypeStruct((n_pad, c_out_pad), jnp.float32),
        scratch_shapes=acc_scratch,
        compiler_params=par2,
    )(adj, msg1, x1h, p["w1_1"], p["b1_1"], p["g1"], p["be1"],
      p["w2_1"], p["b2_1"], p["ln0_g"], p["ln0_b"], w_out_p, b_out_p)

    return out_pad[:num_nodes, :c_out]


# ------------------------------ plain-JAX reference --------------------------

def deepgcn_reference(x, edge_index, params, num_nodes):
    """Plain-JAX reference mirroring the kernel math (same padding, int8->bf16
    adjacency, exact-shift softmax with bf16 packed messages, f32 accumulation)."""
    p = params
    n_pad = _round_up(max(num_nodes, 1), NODE_TILE)
    e_src, e_dst = edge_index[0], edge_index[1]
    adj = jnp.zeros((n_pad, n_pad), jnp.int8).at[e_dst, e_src].add(
        jnp.ones(e_src.shape, jnp.int8)).astype(jnp.bfloat16)
    x_pad = (jnp.zeros((n_pad, x.shape[1]), jnp.float32)
             .at[:x.shape[0], :].set(x.astype(jnp.float32)))

    def ln(hh, g, b):
        mu = jnp.mean(hh, -1, keepdims=True)
        var = jnp.mean((hh - mu) ** 2, -1, keepdims=True)
        return (hh - mu) * jax.lax.rsqrt(var + EPS_LN) * g + b

    def aggregate(feat, t):
        m = jnp.maximum(feat, 0.0) + EPS_MSG
        shift = jnp.max(t * m, axis=0, keepdims=True)
        e = jnp.exp(t * m - shift)
        msg = jnp.concatenate([e * m, e], axis=-1).astype(jnp.bfloat16)
        aggp = jnp.dot(adj, msg, preferred_element_type=jnp.float32)
        num, den = aggp[:, :HID], aggp[:, HID:]
        return jnp.where(den > 0, num / jnp.where(den > 0, den, 1.0), 0.0)

    def mlp(hh, w1, b1, g, be, w2, b2):
        hh = hh @ w1 + b1
        hh = jnp.maximum(ln(hh, g, be), 0.0)
        return hh @ w2 + b2

    x32 = x_pad @ p["w_enc"] + p["b_enc"]
    x1 = mlp(aggregate(x32, p["t0"][0]) + x32,
             p["w1_0"], p["b1_0"], p["g0"], p["be0"], p["w2_0"], p["b2_0"])
    h = jnp.maximum(ln(x1, p["ln1_g"], p["ln1_b"]), 0.0)
    x2 = x1 + mlp(aggregate(h, p["t1"][0]) + h,
                  p["w1_1"], p["b1_1"], p["g1"], p["be1"], p["w2_1"], p["b2_1"])
    y = jnp.maximum(ln(x2, p["ln0_g"], p["ln0_b"]), 0.0)
    return (y @ p["w_out"] + p["b_out"])[:num_nodes]


# ---------------------------------- params -----------------------------------

def init_params(key, in_channels, out_channels, hidden=HID, expansion=2):
    hid2 = hidden * expansion
    ks = jax.random.split(key, 16)
    f32 = jnp.float32

    def lin(k, fan_in, fan_out):
        scale = 1.0 / jnp.sqrt(fan_in)
        return (jax.random.uniform(k, (fan_in, fan_out), f32, -scale, scale),
                jnp.zeros((1, fan_out), f32))

    w_enc, b_enc = lin(ks[0], in_channels, hidden)
    w1_0, b1_0 = lin(ks[1], hidden, hid2)
    w2_0, b2_0 = lin(ks[2], hid2, hidden)
    w1_1, b1_1 = lin(ks[3], hidden, hid2)
    w2_1, b2_1 = lin(ks[4], hid2, hidden)
    w_out, b_out = lin(ks[5], hidden, out_channels)

    return dict(
        w_enc=w_enc, b_enc=b_enc,
        t0=jnp.ones((1,), f32), t1=jnp.ones((1,), f32),   # learn_t init = 1.0
        w1_0=w1_0, b1_0=b1_0, g0=jnp.ones((1, hid2), f32), be0=jnp.zeros((1, hid2), f32),
        w2_0=w2_0, b2_0=b2_0,
        w1_1=w1_1, b1_1=b1_1, g1=jnp.ones((1, hid2), f32), be1=jnp.zeros((1, hid2), f32),
        w2_1=w2_1, b2_1=b2_1,
        ln0_g=jnp.ones((1, hidden), f32), ln0_b=jnp.zeros((1, hidden), f32),
        ln1_g=jnp.ones((1, hidden), f32), ln1_b=jnp.zeros((1, hidden), f32),
        w_out=w_out, b_out=b_out,
    )


if __name__ == "__main__":
    key = jax.random.PRNGKey(0)
    k_x, k_src, k_dst, k_param = jax.random.split(key, 4)

    num_nodes = 200          # pads to 512 -> aggregation grid (2 dst tiles, 1 src tile)
    in_channels = 8
    out_channels = 4
    num_edges = 800

    x = jax.random.normal(k_x, (num_nodes, in_channels), jnp.float32)
    src = jax.random.randint(k_src, (num_edges,), 0, num_nodes, jnp.int32)
    dst = jax.random.randint(k_dst, (num_edges,), 0, num_nodes, jnp.int32)
    edge_index = jnp.stack([src, dst], axis=0)          # [2, E], PyG convention

    params = init_params(k_param, in_channels, out_channels)

    out = deepgcn_forward(x, edge_index, params, num_nodes)
    out = jax.block_until_ready(out)

    ref = deepgcn_reference(x, edge_index, params, num_nodes)
    assert out.shape == (num_nodes, out_channels)
    assert jnp.allclose(out, ref, rtol=1e-2, atol=1e-2), "mismatch vs reference"

    print("KERNEL_OK")
</pallas_src>

<mosaic_0001>
module attributes {stable_mosaic.version = 11 : i64} {
  func.func @encode_kernel(%arg0: i32, %arg1: memref<512x8xf32, #tpu.memory_space<vmem>>, %arg2: memref<8x32xf32, #tpu.memory_space<vmem>>, %arg3: memref<1x32xf32, #tpu.memory_space<vmem>>, %arg4: memref<512x32xf32, #tpu.memory_space<vmem>>) attributes {dimension_semantics = [#tpu.dimension_semantics<parallel>], iteration_bounds = array<i64: 1>, scalar_prefetch = 0 : i64, scratch_operands = 0 : i64, tpu.core_type = #tpu.core_type<tc>, window_params = [{transform_indices = @transform_0, window_bounds = array<i64: 512, 8>}, {pipeline_mode = #tpu.pipeline_mode<synchronous>, transform_indices = @transform_1, window_bounds = array<i64: 8, 32>}, {pipeline_mode = #tpu.pipeline_mode<synchronous>, transform_indices = @transform_2, window_bounds = array<i64: 1, 32>}, {transform_indices = @transform_3, window_bounds = array<i64: 512, 32>}]} {
    %c0 = arith.constant 0 : index
    %c0_0 = arith.constant 0 : index
    %0 = vector.load %arg1[%c0, %c0_0] : memref<512x8xf32, #tpu.memory_space<vmem>>, vector<512x8xf32>
    %c0_1 = arith.constant 0 : index
    %c0_2 = arith.constant 0 : index
    %1 = vector.load %arg2[%c0_1, %c0_2] : memref<8x32xf32, #tpu.memory_space<vmem>>, vector<8x32xf32>
    %cst = arith.constant dense<0.000000e+00> : vector<512x32xf32>
    %2 = tpu.matmul %0, %1, %cst {dimension_numbers = #tpu.dot_dimension_numbers<[1], [0], [0], [1], [0, 0, 1, 1], [], []>} : vector<512x8xf32>, vector<8x32xf32>, vector<512x32xf32> -> vector<512x32xf32>
    %c0_3 = arith.constant 0 : index
    %c0_4 = arith.constant 0 : index
    %3 = vector.load %arg3[%c0_3, %c0_4] : memref<1x32xf32, #tpu.memory_space<vmem>>, vector<1x32xf32>
    %4 = vector.broadcast %3 : vector<1x32xf32> to vector<512x32xf32>
    %5 = arith.addf %2, %4 : vector<512x32xf32>
    %c0_5 = arith.constant 0 : index
    %c0_6 = arith.constant 0 : index
    %6 = vector.load %arg4[%c0_5, %c0_6] : memref<512x32xf32, #tpu.memory_space<vmem>>, vector<512x32xf32>
    tpu.vector_store %arg4[%c0_5, %c0_6], %5 {strides = array<i32>} : memref<512x32xf32, #tpu.memory_space<vmem>>, vector<512x32xf32>,
    return
  }
  func.func @transform_0(%arg0: i32) -> (i32, i32) {
    %c0_i32 = arith.constant 0 : i32
    %c0_i32_0 = arith.constant 0 : i32
    return %arg0, %c0_i32 : i32, i32
  }
  func.func @transform_1(%arg0: i32) -> (i32, i32) {
    %c0_i32 = arith.constant 0 : i32
    %c0_i32_0 = arith.constant 0 : i32
    %c0_i32_1 = arith.constant 0 : i32
    return %c0_i32, %c0_i32_0 : i32, i32
  }
  func.func @transform_2(%arg0: i32) -> (i32, i32) {
    %c0_i32 = arith.constant 0 : i32
    %c0_i32_0 = arith.constant 0 : i32
    %c0_i32_1 = arith.constant 0 : i32
    return %c0_i32, %c0_i32_0 : i32, i32
  }
  func.func @transform_3(%arg0: i32) -> (i32, i32) {
    %c0_i32 = arith.constant 0 : i32
    %c0_i32_0 = arith.constant 0 : i32
    return %arg0, %c0_i32 : i32, i32
  }
}

</mosaic_0001>

<llo_original>
// kernel: tpu_custom_call.1
$region0: #{tpu_custom_call.1}
  #allocation0 [shape = 'u32[]', space=smem, size = 0x4, offset = 0x4, fixed_abs, tag = 'smem constant byte address 0x4 - core index']
  #allocation1 [shape = 'u32[144,128]{1,0:T(1,128)}', space=vmem, size = 0x12000, scoped, tag = 'internal scratch']
  %s0 = inlined_call_operand.vmem [shape: f32[512,8], index: 0, kind: input, shape index: {}]
  %s1 = inlined_call_operand.vmem [shape: f32[8,32], index: 1, kind: input, shape index: {}]
  %s2 = inlined_call_operand.vmem [shape: f32[1,32], index: 2, kind: input, shape index: {}]
  %s3 = inlined_call_operand.vmem [shape: f32[512,32], index: 3, kind: output, shape index: {}]
  %s4 = sld [smem:[#allocation0]]
  $region22: #{tpu_custom_call.1} parent=0
    _
  %s6 = ssub.s32 1, %s4
  %s7 = scalar_select 0, %s6, %s4
  // Predicated region
  $region2: #{tpu_custom_call.1} parent=0 // pred_check
    _
  $region3: #{tpu_custom_call.1} parent=0 // pred_check_branch
    %9 = sbr.rel (0) target = $region5
  $region4: #{tpu_custom_call.1} parent=0 // pred_region
    _
  $region5: #{tpu_custom_call.1} parent=0 // pred_fallthru
    _
  // Predicated region
  $region6: #{tpu_custom_call.1} parent=0 // pred_check
    _
  $region7: #{tpu_custom_call.1} parent=0 // pred_check_branch
    %11 = sbr.rel (0) target = $region9
  $region8: #{tpu_custom_call.1} parent=0 // pred_region
    _
  $region9: #{tpu_custom_call.1} parent=0 // pred_fallthru
    _
  // Predicated region
  $region10: #{tpu_custom_call.1} parent=0 // pred_check
    _
  $region11: #{tpu_custom_call.1} parent=0 // pred_check_branch
    %13 = sbr.rel (0) target = $region13
  $region12: #{tpu_custom_call.1} parent=0 // pred_region
    _
  $region13: #{tpu_custom_call.1} parent=0 // pred_fallthru
    _
  %v14 = vld [vmem:[%s0] sm:$0xff]
  %v15 = vld [vmem:[%s0 + $0x8] sm:$0xff]
  %v16 = vld [vmem:[%s0 + $0x10] sm:$0xff]
  %v17 = vld [vmem:[%s0 + $0x18] sm:$0xff]
  %v18 = vld [vmem:[%s0 + $0x20] sm:$0xff]
  %v19 = vld [vmem:[%s0 + $0x28] sm:$0xff]
  %v20 = vld [vmem:[%s0 + $0x30] sm:$0xff]
  %v21 = vld [vmem:[%s0 + $0x38] sm:$0xff]
  %v22 = vld [vmem:[%s0 + $0x40] sm:$0xff]
  %v23 = vld [vmem:[%s0 + $0x48] sm:$0xff]
  %v24 = vld [vmem:[%s0 + $0x50] sm:$0xff]
  %v25 = vld [vmem:[%s0 + $0x58] sm:$0xff]
  %v26 = vld [vmem:[%s0 + $0x60] sm:$0xff]
  %v27 = vld [vmem:[%s0 + $0x68] sm:$0xff]
  %v28 = vld [vmem:[%s0 + $0x70] sm:$0xff]
  %v29 = vld [vmem:[%s0 + $0x78] sm:$0xff]
  %v30 = vld [vmem:[%s0 + $0x80] sm:$0xff]
  %v31 = vld [vmem:[%s0 + $0x88] sm:$0xff]
  %v32 = vld [vmem:[%s0 + $0x90] sm:$0xff]
  %v33 = vld [vmem:[%s0 + $0x98] sm:$0xff]
  %v34 = vld [vmem:[%s0 + $0xa0] sm:$0xff]
  %v35 = vld [vmem:[%s0 + $0xa8] sm:$0xff]
  %v36 = vld [vmem:[%s0 + $0xb0] sm:$0xff]
  %v37 = vld [vmem:[%s0 + $0xb8] sm:$0xff]
  %v38 = vld [vmem:[%s0 + $0xc0] sm:$0xff]
  %v39 = vld [vmem:[%s0 + $0xc8] sm:$0xff]
  %v40 = vld [vmem:[%s0 + $0xd0] sm:$0xff]
  %v41 = vld [vmem:[%s0 + $0xd8] sm:$0xff]
  %v42 = vld [vmem:[%s0 + $0xe0] sm:$0xff]
  %v43 = vld [vmem:[%s0 + $0xe8] sm:$0xff]
  %v44 = vld [vmem:[%s0 + $0xf0] sm:$0xff]
  %v45 = vld [vmem:[%s0 + $0xf8] sm:$0xff]
  %v46 = vld [vmem:[%s0 + $0x100] sm:$0xff]
  %v47 = vld [vmem:[%s0 + $0x108] sm:$0xff]
  %v48 = vld [vmem:[%s0 + $0x110] sm:$0xff]
  %v49 = vld [vmem:[%s0 + $0x118] sm:$0xff]
  %v50 = vld [vmem:[%s0 + $0x120] sm:$0xff]
  %v51 = vld [vmem:[%s0 + $0x128] sm:$0xff]
  %v52 = vld [vmem:[%s0 + $0x130] sm:$0xff]
  %v53 = vld [vmem:[%s0 + $0x138] sm:$0xff]
  %v54 = vld [vmem:[%s0 + $0x140] sm:$0xff]
  %v55 = vld [vmem:[%s0 + $0x148] sm:$0xff]
  %v56 = vld [vmem:[%s0 + $0x150] sm:$0xff]
  %v57 = vld [vmem:[%s0 + $0x158] sm:$0xff]
  %v58 = vld [vmem:[%s0 + $0x160] sm:$0xff]
  %v59 = vld [vmem:[%s0 + $0x168] sm:$0xff]
  %v60 = vld [vmem:[%s0 + $0x170] sm:$0xff]
  %v61 = vld [vmem:[%s0 + $0x178] sm:$0xff]
  %v62 = vld [vmem:[%s0 + $0x180] sm:$0xff]
  %v63 = vld [vmem:[%s0 + $0x188] sm:$0xff]
  %v64 = vld [vmem:[%s0 + $0x190] sm:$0xff]
  %v65 = vld [vmem:[%s0 + $0x198] sm:$0xff]
  %v66 = vld [vmem:[%s0 + $0x1a0] sm:$0xff]
  %v67 = vld [vmem:[%s0 + $0x1a8] sm:$0xff]
  %v68 = vld [vmem:[%s0 + $0x1b0] sm:$0xff]
  %v69 = vld [vmem:[%s0 + $0x1b8] sm:$0xff]
  %v70 = vld [vmem:[%s0 + $0x1c0] sm:$0xff]
  %v71 = vld [vmem:[%s0 + $0x1c8] sm:$0xff]
  %v72 = vld [vmem:[%s0 + $0x1d0] sm:$0xff]
  %v73 = vld [vmem:[%s0 + $0x1d8] sm:$0xff]
  %v74 = vld [vmem:[%s0 + $0x1e0] sm:$0xff]
  %v75 = vld [vmem:[%s0 + $0x1e8] sm:$0xff]
  %v76 = vld [vmem:[%s0 + $0x1f0] sm:$0xff]
  %v77 = vld [vmem:[%s0 + $0x1f8] sm:$0xff]
  %v78 = vld [vmem:[%s1] sm:$0xff]
  %v79 = vld [vmem:[%s2] sm:$0x1]
  %v81 = vlaneseq
  %v82 = vshrl.u32 %v81, 7
  %v83 = vsub.s32 0, %v82
  %v84 = vrot.slane %v79, %v83
  %vm86 = vcmask 64512
  %v88 = vsel %vm86, %v14, 0
  %v91 = vsel %vm86, %v15, 0
  %v94 = vsel %vm86, %v16, 0
  %v97 = vsel %vm86, %v17, 0
  %v100 = vsel %vm86, %v18, 0
  %v103 = vsel %vm86, %v19, 0
  %v106 = vsel %vm86, %v20, 0
  %v109 = vsel %vm86, %v21, 0
  %v112 = vsel %vm86, %v22, 0
  %v115 = vsel %vm86, %v23, 0
  %v118 = vsel %vm86, %v24, 0
  %v121 = vsel %vm86, %v25, 0
  %v124 = vsel %vm86, %v26, 0
  %v127 = vsel %vm86, %v27, 0
  %v130 = vsel %vm86, %v28, 0
  %v133 = vsel %vm86, %v29, 0
  %v136 = vsel %vm86, %v30, 0
  %v139 = vsel %vm86, %v31, 0
  %v142 = vsel %vm86, %v32, 0
  %v145 = vsel %vm86, %v33, 0
  %v148 = vsel %vm86, %v34, 0
  %v151 = vsel %vm86, %v35, 0
  %v154 = vsel %vm86, %v36, 0
  %v157 = vsel %vm86, %v37, 0
  %v160 = vsel %vm86, %v38, 0
  %v163 = vsel %vm86, %v39, 0
  %v166 = vsel %vm86, %v40, 0
  %v169 = vsel %vm86, %v41, 0
  %v172 = vsel %vm86, %v42, 0
  %v175 = vsel %vm86, %v43, 0
  %v178 = vsel %vm86, %v44, 0
  %v181 = vsel %vm86, %v45, 0
  %v184 = vsel %vm86, %v46, 0
  %v187 = vsel %vm86, %v47, 0
  %v190 = vsel %vm86, %v48, 0
  %v193 = vsel %vm86, %v49, 0
  %v196 = vsel %vm86, %v50, 0
  %v199 = vsel %vm86, %v51, 0
  %v202 = vsel %vm86, %v52, 0
  %v205 = vsel %vm86, %v53, 0
  %v208 = vsel %vm86, %v54, 0
  %v211 = vsel %vm86, %v55, 0
  %v214 = vsel %vm86, %v56, 0
  %v217 = vsel %vm86, %v57, 0
  %v220 = vsel %vm86, %v58, 0
  %v223 = vsel %vm86, %v59, 0
  %v226 = vsel %vm86, %v60, 0
  %v229 = vsel %vm86, %v61, 0
  %v232 = vsel %vm86, %v62, 0
  %v235 = vsel %vm86, %v63, 0
  %v238 = vsel %vm86, %v64, 0
  %v241 = vsel %vm86, %v65, 0
  %v244 = vsel %vm86, %v66, 0
  %v247 = vsel %vm86, %v67, 0
  %v250 = vsel %vm86, %v68, 0
  %v253 = vsel %vm86, %v69, 0
  %v256 = vsel %vm86, %v70, 0
  %v259 = vsel %vm86, %v71, 0
  %v262 = vsel %vm86, %v72, 0
  %v265 = vsel %vm86, %v73, 0
  %v268 = vsel %vm86, %v74, 0
  %v271 = vsel %vm86, %v75, 0
  %v274 = vsel %vm86, %v76, 0
  %v277 = vsel %vm86, %v77, 0
  %279 = vmatprep.subr.mxu0 0.0
  %280 = vmatpush1.msra.mxu0 %v78
  %281 = vmatprep.subr.mxu0 0.0
  %282 = vmatpush1.msra.mxu0 0.0
  %283 = vmatprep.subr.mxu0 0.0
  %284 = vmatpush1.msra.mxu0 0.0
  %285 = vmatprep.subr.mxu0 0.0
  %286 = vmatpush1.msra.mxu0 0.0
  %287 = vmatprep.subr.mxu0 0.0
  %288 = vmatpush1.msra.mxu0 0.0
  %289 = vmatprep.subr.mxu0 0.0
  %290 = vmatpush1.msra.mxu0 0.0
  %291 = vmatprep.subr.mxu0 0.0
  %292 = vmatpush1.msra.mxu0 0.0
  %293 = vmatprep.subr.mxu0 0.0
  %294 = vmatpush1.msra.mxu0 0.0
  %295 = vmatprep.subr.mxu0 0.0
  %296 = vmatpush1.msra.mxu0 0.0
  %297 = vmatprep.subr.mxu0 0.0
  %298 = vmatpush1.msra.mxu0 0.0
  %299 = vmatprep.subr.mxu0 0.0
  %300 = vmatpush1.msra.mxu0 0.0
  %301 = vmatprep.subr.mxu0 0.0
  %302 = vmatpush1.msra.mxu0 0.0
  %303 = vmatprep.subr.mxu0 0.0
  %304 = vmatpush1.msra.mxu0 0.0
  %305 = vmatprep.subr.mxu0 0.0
  %306 = vmatpush1.msra.mxu0 0.0
  %307 = vmatprep.subr.mxu0 0.0
  %308 = vmatpush1.msra.mxu0 0.0
  %309 = vmatprep.subr.mxu0 0.0
  %310 = vmatpush1.msra.mxu0 0.0
  %311 = vmatprep.subr.mxu0 0.0
  %312 = vmatpush1.msra.mxu0 0.0
  %313 = vmatprep.subr.mxu0 0.0
  %314 = vmatpush1.msra.mxu0 0.0
  %315 = vmatprep.subr.mxu0 0.0
  %316 = vmatpush1.msra.mxu0 0.0
  %317 = vmatprep.subr.mxu0 0.0
  %318 = vmatpush1.msra.mxu0 0.0
  %319 = vmatprep.subr.mxu0 0.0
  %320 = vmatpush1.msra.mxu0 0.0
  %321 = vmatprep.subr.mxu0 0.0
  %322 = vmatpush1.msra.mxu0 0.0
  %323 = vmatprep.subr.mxu0 0.0
  %324 = vmatpush1.msra.mxu0 0.0
  %325 = vmatprep.subr.mxu0 0.0
  %326 = vmatpush1.msra.mxu0 0.0
  %327 = vmatprep.subr.mxu0 0.0
  %328 = vmatpush1.msra.mxu0 0.0
  %329 = vmatprep.subr.mxu0 0.0
  %330 = vmatpush1.msra.mxu0 0.0
  %331 = vmatprep.subr.mxu0 0.0
  %332 = vmatpush1.msra.mxu0 0.0
  %333 = vmatprep.subr.mxu0 0.0
  %334 = vmatpush1.msra.mxu0 0.0
  %335 = vmatprep.subr.mxu0 0.0
  %336 = vmatpush1.msra.mxu0 0.0
  %337 = vmatprep.subr.mxu0 0.0
  %338 = vmatpush1.msra.mxu0 0.0
  %339 = vmatprep.subr.mxu0 0.0
  %340 = vmatpush1.msra.mxu0 0.0
  %341 = vmatprep.subr.mxu0 0.0
  %342 = vmatpush1.msra.mxu0 0.0
  %343 = vmatprep.mubr.f32.mxu0 0.0
  %344 = vmatmul.mubr.f32.gmra.mrb[0].mxu0 %v88
  %v345 = vpop.f32.mrb[0].mxu0
  %v346 = vadd.f32 %v84, %v345
  %v347 = vpop.f32.mrb[0].mxu0
  %348 = vmatprep.mubr.f32.mxu0 0.0
  %349 = vmatmul.mubr.f32.gmra.mrb[0].mxu0 %v91
  %v350 = vpop.f32.mrb[0].mxu0
  %v351 = vadd.f32 %v84, %v350
  %v352 = vpop.f32.mrb[0].mxu0
  %353 = vmatprep.mubr.f32.mxu0 0.0
  %354 = vmatmul.mubr.f32.gmra.mrb[0].mxu0 %v94
  %v355 = vpop.f32.mrb[0].mxu0
  %v356 = vadd.f32 %v84, %v355
  %v357 = vpop.f32.mrb[0].mxu0
  %358 = vmatprep.mubr.f32.mxu0 0.0
  %359 = vmatmul.mubr.f32.gmra.mrb[0].mxu0 %v97
  %v360 = vpop.f32.mrb[0].mxu0
  %v361 = vadd.f32 %v84, %v360
  %v362 = vpop.f32.mrb[0].mxu0
  %363 = vmatprep.mubr.f32.mxu0 0.0
  %364 = vmatmul.mubr.f32.gmra.mrb[0].mxu0 %v100
  %v365 = vpop.f32.mrb[0].mxu0
  %v366 = vadd.f32 %v84, %v365
  %v367 = vpop.f32.mrb[0].mxu0
  %368 = vmatprep.mubr.f32.mxu0 0.0
  %369 = vmatmul.mubr.f32.gmra.mrb[0].mxu0 %v103
  %v370 = vpop.f32.mrb[0].mxu0
  %v371 = vadd.f32 %v84, %v370
  %v372 = vpop.f32.mrb[0].mxu0
  %373 = vmatprep.mubr.f32.mxu0 0.0
  %374 = vmatmul.mubr.f32.gmra.mrb[0].mxu0 %v106
  %v375 = vpop.f32.mrb[0].mxu0
  %v376 = vadd.f32 %v84, %v375
  %v377 = vpop.f32.mrb[0].mxu0
  %378 = vmatprep.mubr.f32.mxu0 0.0
  %379 = vmatmul.mubr.f32.gmra.mrb[0].mxu0 %v109
  %v380 = vpop.f32.mrb[0].mxu0
  %v381 = vadd.f32 %v84, %v380
  %v382 = vpop.f32.mrb[0].mxu0
  %383 = vmatprep.mubr.f32.mxu0 0.0
  %384 = vmatmul.mubr.f32.gmra.mrb[0].mxu0 %v112
  %v385 = vpop.f32.mrb[0].mxu0
  %v386 = vadd.f32 %v84, %v385
  %v387 = vpop.f32.mrb[0].mxu0
  %388 = vmatprep.mubr.f32.mxu0 0.0
  %389 = vmatmul.mubr.f32.gmra.mrb[0].mxu0 %v115
  %v390 = vpop.f32.mrb[0].mxu0
  %v391 = vadd.f32 %v84, %v390
  %v392 = vpop.f32.mrb[0].mxu0
  %393 = vmatprep.mubr.f32.mxu0 0.0
  %394 = vmatmul.mubr.f32.gmra.mrb[0].mxu0 %v118
  %v395 = vpop.f32.mrb[0].mxu0
  %v396 = vadd.f32 %v84, %v395
  %v397 = vpop.f32.mrb[0].mxu0
  %398 = vmatprep.mubr.f32.mxu0 0.0
  %399 = vmatmul.mubr.f32.gmra.mrb[0].mxu0 %v121
  %v400 = vpop.f32.mrb[0].mxu0
  %v401 = vadd.f32 %v84, %v400
  %v402 = vpop.f32.mrb[0].mxu0
  %403 = vmatprep.mubr.f32.mxu0 0.0
  %404 = vmatmul.mubr.f32.gmra.mrb[0].mxu0 %v124
  %v405 = vpop.f32.mrb[0].mxu0
  %v406 = vadd.f32 %v84, %v405
  %v407 = vpop.f32.mrb[0].mxu0
  %408 = vmatprep.mubr.f32.mxu0 0.0
  %409 = vmatmul.mubr.f32.gmra.mrb[0].mxu0 %v127
  %v410 = vpop.f32.mrb[0].mxu0
  %v411 = vadd.f32 %v84, %v410
  %v412 = vpop.f32.mrb[0].mxu0
  %413 = vmatprep.mubr.f32.mxu0 0.0
  %414 = vmatmul.mubr.f32.gmra.mrb[0].mxu0 %v130
  %v415 = vpop.f32.mrb[0].mxu0
  %v416 = vadd.f32 %v84, %v415
  %v417 = vpop.f32.mrb[0].mxu0
  %418 = vmatprep.mubr.f32.mxu0 0.0
  %419 = vmatmul.mubr.f32.gmra.mrb[0].mxu0 %v133
  %v420 = vpop.f32.mrb[0].mxu0
  %v421 = vadd.f32 %v84, %v420
  %v422 = vpop.f32.mrb[0].mxu0
  %423 = vmatprep.mubr.f32.mxu0 0.0
  %424 = vmatmul.mubr.f32.gmra.mrb[0].mxu0 %v136
  %v425 = vpop.f32.mrb[0].mxu0
  %v426 = vadd.f32 %v84, %v425
  %v427 = vpop.f32.mrb[0].mxu0
  %428 = vmatprep.mubr.f32.mxu0 0.0
  %429 = vmatmul.mubr.f32.gmra.mrb[0].mxu0 %v139
  %v430 = vpop.f32.mrb[0].mxu0
  %v431 = vadd.f32 %v84, %v430
  %v432 = vpop.f32.mrb[0].mxu0
  %433 = vmatprep.mubr.f32.mxu0 0.0
  %434 = vmatmul.mubr.f32.gmra.mrb[0].mxu0 %v142
  %v435 = vpop.f32.mrb[0].mxu0
  %v436 = vadd.f32 %v84, %v435
  %v437 = vpop.f32.mrb[0].mxu0
  %438 = vmatprep.mubr.f32.mxu0 0.0
  %439 = vmatmul.mubr.f32.gmra.mrb[0].mxu0 %v145
  %v440 = vpop.f32.mrb[0].mxu0
  %v441 = vadd.f32 %v84, %v440
  %v442 = vpop.f32.mrb[0].mxu0
  %443 = vmatprep.mubr.f32.mxu0 0.0
  %444 = vmatmul.mubr.f32.gmra.mrb[0].mxu0 %v148
  %v445 = vpop.f32.mrb[0].mxu0
  %v446 = vadd.f32 %v84, %v445
  %v447 = vpop.f32.mrb[0].mxu0
  %448 = vmatprep.mubr.f32.mxu0 0.0
  %449 = vmatmul.mubr.f32.gmra.mrb[0].mxu0 %v151
  %v450 = vpop.f32.mrb[0].mxu0
  %v451 = vadd.f32 %v84, %v450
  %v452 = vpop.f32.mrb[0].mxu0
  %453 = vmatprep.mubr.f32.mxu0 0.0
  %454 = vmatmul.mubr.f32.gmra.mrb[0].mxu0 %v154
  %v455 = vpop.f32.mrb[0].mxu0
  %v456 = vadd.f32 %v84, %v455
  %v457 = vpop.f32.mrb[0].mxu0
  %458 = vmatprep.mubr.f32.mxu0 0.0
  %459 = vmatmul.mubr.f32.gmra.mrb[0].mxu0 %v157
  %v460 = vpop.f32.mrb[0].mxu0
  %v461 = vadd.f32 %v84, %v460
  %v462 = vpop.f32.mrb[0].mxu0
  %463 = vmatprep.mubr.f32.mxu0 0.0
  %464 = vmatmul.mubr.f32.gmra.mrb[0].mxu0 %v160
  %v465 = vpop.f32.mrb[0].mxu0
  %v466 = vadd.f32 %v84, %v465
  %v467 = vpop.f32.mrb[0].mxu0
  %468 = vmatprep.mubr.f32.mxu0 0.0
  %469 = vmatmul.mubr.f32.gmra.mrb[0].mxu0 %v163
  %v470 = vpop.f32.mrb[0].mxu0
  %v471 = vadd.f32 %v84, %v470
  %v472 = vpop.f32.mrb[0].mxu0
  %473 = vmatprep.mubr.f32.mxu0 0.0
  %474 = vmatmul.mubr.f32.gmra.mrb[0].mxu0 %v166
  %v475 = vpop.f32.mrb[0].mxu0
  %v476 = vadd.f32 %v84, %v475
  %v477 = vpop.f32.mrb[0].mxu0
  %478 = vmatprep.mubr.f32.mxu0 0.0
  %479 = vmatmul.mubr.f32.gmra.mrb[0].mxu0 %v169
  %v480 = vpop.f32.mrb[0].mxu0
  %v481 = vadd.f32 %v84, %v480
  %v482 = vpop.f32.mrb[0].mxu0
  %483 = vmatprep.mubr.f32.mxu0 0.0
  %484 = vmatmul.mubr.f32.gmra.mrb[0].mxu0 %v172
  %v485 = vpop.f32.mrb[0].mxu0
  %v486 = vadd.f32 %v84, %v485
  %v487 = vpop.f32.mrb[0].mxu0
  %488 = vmatprep.mubr.f32.mxu0 0.0
  %489 = vmatmul.mubr.f32.gmra.mrb[0].mxu0 %v175
  %v490 = vpop.f32.mrb[0].mxu0
  %v491 = vadd.f32 %v84, %v490
  %v492 = vpop.f32.mrb[0].mxu0
  %493 = vmatprep.mubr.f32.mxu0 0.0
  %494 = vmatmul.mubr.f32.gmra.mrb[0].mxu0 %v178
  %v495 = vpop.f32.mrb[0].mxu0
  %v496 = vadd.f32 %v84, %v495
  %v497 = vpop.f32.mrb[0].mxu0
  %498 = vmatprep.mubr.f32.mxu0 0.0
  %499 = vmatmul.mubr.f32.gmra.mrb[0].mxu0 %v181
  %v500 = vpop.f32.mrb[0].mxu0
  %v501 = vadd.f32 %v84, %v500
  %v502 = vpop.f32.mrb[0].mxu0
  %503 = vmatprep.mubr.f32.mxu0 0.0
  %504 = vmatmul.mubr.f32.gmra.mrb[0].mxu0 %v184
  %v505 = vpop.f32.mrb[0].mxu0
  %v506 = vadd.f32 %v84, %v505
  %v507 = vpop.f32.mrb[0].mxu0
  %508 = vmatprep.mubr.f32.mxu0 0.0
  %509 = vmatmul.mubr.f32.gmra.mrb[0].mxu0 %v187
  %v510 = vpop.f32.mrb[0].mxu0
  %v511 = vadd.f32 %v84, %v510
  %v512 = vpop.f32.mrb[0].mxu0
  %513 = vmatprep.mubr.f32.mxu0 0.0
  %514 = vmatmul.mubr.f32.gmra.mrb[0].mxu0 %v190
  %v515 = vpop.f32.mrb[0].mxu0
  %v516 = vadd.f32 %v84, %v515
  %v517 = vpop.f32.mrb[0].mxu0
  %518 = vmatprep.mubr.f32.mxu0 0.0
  %519 = vmatmul.mubr.f32.gmra.mrb[0].mxu0 %v193
  %v520 = vpop.f32.mrb[0].mxu0
  %v521 = vadd.f32 %v84, %v520
  %v522 = vpop.f32.mrb[0].mxu0
  %523 = vmatprep.mubr.f32.mxu0 0.0
  %524 = vmatmul.mubr.f32.gmra.mrb[0].mxu0 %v196
  %v525 = vpop.f32.mrb[0].mxu0
  %v526 = vadd.f32 %v84, %v525
  %v527 = vpop.f32.mrb[0].mxu0
  %528 = vmatprep.mubr.f32.mxu0 0.0
  %529 = vmatmul.mubr.f32.gmra.mrb[0].mxu0 %v199
  %v530 = vpop.f32.mrb[0].mxu0
  %v531 = vadd.f32 %v84, %v530
  %v532 = vpop.f32.mrb[0].mxu0
  %533 = vmatprep.mubr.f32.mxu0 0.0
  %534 = vmatmul.mubr.f32.gmra.mrb[0].mxu0 %v202
  %v535 = vpop.f32.mrb[0].mxu0
  %v536 = vadd.f32 %v84, %v535
  %v537 = vpop.f32.mrb[0].mxu0
  %538 = vmatprep.mubr.f32.mxu0 0.0
  %539 = vmatmul.mubr.f32.gmra.mrb[0].mxu0 %v205
  %v540 = vpop.f32.mrb[0].mxu0
  %v541 = vadd.f32 %v84, %v540
  %v542 = vpop.f32.mrb[0].mxu0
  %543 = vmatprep.mubr.f32.mxu0 0.0
  %544 = vmatmul.mubr.f32.gmra.mrb[0].mxu0 %v208
  %v545 = vpop.f32.mrb[0].mxu0
  %v546 = vadd.f32 %v84, %v545
  %v547 = vpop.f32.mrb[0].mxu0
  %548 = vmatprep.mubr.f32.mxu0 0.0
  %549 = vmatmul.mubr.f32.gmra.mrb[0].mxu0 %v211
  %v550 = vpop.f32.mrb[0].mxu0
  %v551 = vadd.f32 %v84, %v550
  %v552 = vpop.f32.mrb[0].mxu0
  %553 = vmatprep.mubr.f32.mxu0 0.0
  %554 = vmatmul.mubr.f32.gmra.mrb[0].mxu0 %v214
  %v555 = vpop.f32.mrb[0].mxu0
  %v556 = vadd.f32 %v84, %v555
  %v557 = vpop.f32.mrb[0].mxu0
  %558 = vmatprep.mubr.f32.mxu0 0.0
  %559 = vmatmul.mubr.f32.gmra.mrb[0].mxu0 %v217
  %v560 = vpop.f32.mrb[0].mxu0
  %v561 = vadd.f32 %v84, %v560
  %v562 = vpop.f32.mrb[0].mxu0
  %563 = vmatprep.mubr.f32.mxu0 0.0
  %564 = vmatmul.mubr.f32.gmra.mrb[0].mxu0 %v220
  %v565 = vpop.f32.mrb[0].mxu0
  %v566 = vadd.f32 %v84, %v565
  %v567 = vpop.f32.mrb[0].mxu0
  %568 = vmatprep.mubr.f32.mxu0 0.0
  %569 = vmatmul.mubr.f32.gmra.mrb[0].mxu0 %v223
  %v570 = vpop.f32.mrb[0].mxu0
  %v571 = vadd.f32 %v84, %v570
  %v572 = vpop.f32.mrb[0].mxu0
  %573 = vmatprep.mubr.f32.mxu0 0.0
  %574 = vmatmul.mubr.f32.gmra.mrb[0].mxu0 %v226
  %v575 = vpop.f32.mrb[0].mxu0
  %v576 = vadd.f32 %v84, %v575
  %v577 = vpop.f32.mrb[0].mxu0
  %578 = vmatprep.mubr.f32.mxu0 0.0
  %579 = vmatmul.mubr.f32.gmra.mrb[0].mxu0 %v229
  %v580 = vpop.f32.mrb[0].mxu0
  %v581 = vadd.f32 %v84, %v580
  %v582 = vpop.f32.mrb[0].mxu0
  %583 = vmatprep.mubr.f32.mxu0 0.0
  %584 = vmatmul.mubr.f32.gmra.mrb[0].mxu0 %v232
  %v585 = vpop.f32.mrb[0].mxu0
  %v586 = vadd.f32 %v84, %v585
  %v587 = vpop.f32.mrb[0].mxu0
  %588 = vmatprep.mubr.f32.mxu0 0.0
  %589 = vmatmul.mubr.f32.gmra.mrb[0].mxu0 %v235
  %v590 = vpop.f32.mrb[0].mxu0
  %v591 = vadd.f32 %v84, %v590
  %v592 = vpop.f32.mrb[0].mxu0
  %593 = vmatprep.mubr.f32.mxu0 0.0
  %594 = vmatmul.mubr.f32.gmra.mrb[0].mxu0 %v238
  %v595 = vpop.f32.mrb[0].mxu0
  %v596 = vadd.f32 %v84, %v595
  %v597 = vpop.f32.mrb[0].mxu0
  %598 = vmatprep.mubr.f32.mxu0 0.0
  %599 = vmatmul.mubr.f32.gmra.mrb[0].mxu0 %v241
  %v600 = vpop.f32.mrb[0].mxu0
  %v601 = vadd.f32 %v84, %v600
  %v602 = vpop.f32.mrb[0].mxu0
  %603 = vmatprep.mubr.f32.mxu0 0.0
  %604 = vmatmul.mubr.f32.gmra.mrb[0].mxu0 %v244
  %v605 = vpop.f32.mrb[0].mxu0
  %v606 = vadd.f32 %v84, %v605
  %v607 = vpop.f32.mrb[0].mxu0
  %608 = vmatprep.mubr.f32.mxu0 0.0
  %609 = vmatmul.mubr.f32.gmra.mrb[0].mxu0 %v247
  %v610 = vpop.f32.mrb[0].mxu0
  %v611 = vadd.f32 %v84, %v610
  %v612 = vpop.f32.mrb[0].mxu0
  %613 = vmatprep.mubr.f32.mxu0 0.0
  %614 = vmatmul.mubr.f32.gmra.mrb[0].mxu0 %v250
  %v615 = vpop.f32.mrb[0].mxu0
  %v616 = vadd.f32 %v84, %v615
  %v617 = vpop.f32.mrb[0].mxu0
  %618 = vmatprep.mubr.f32.mxu0 0.0
  %619 = vmatmul.mubr.f32.gmra.mrb[0].mxu0 %v253
  %v620 = vpop.f32.mrb[0].mxu0
  %v621 = vadd.f32 %v84, %v620
  %v622 = vpop.f32.mrb[0].mxu0
  %623 = vmatprep.mubr.f32.mxu0 0.0
  %624 = vmatmul.mubr.f32.gmra.mrb[0].mxu0 %v256
  %v625 = vpop.f32.mrb[0].mxu0
  %v626 = vadd.f32 %v84, %v625
  %v627 = vpop.f32.mrb[0].mxu0
  %628 = vmatprep.mubr.f32.mxu0 0.0
  %629 = vmatmul.mubr.f32.gmra.mrb[0].mxu0 %v259
  %v630 = vpop.f32.mrb[0].mxu0
  %v631 = vadd.f32 %v84, %v630
  %v632 = vpop.f32.mrb[0].mxu0
  %633 = vmatprep.mubr.f32.mxu0 0.0
  %634 = vmatmul.mubr.f32.gmra.mrb[0].mxu0 %v262
  %v635 = vpop.f32.mrb[0].mxu0
  %v636 = vadd.f32 %v84, %v635
  %v637 = vpop.f32.mrb[0].mxu0
  %638 = vmatprep.mubr.f32.mxu0 0.0
  %639 = vmatmul.mubr.f32.gmra.mrb[0].mxu0 %v265
  %v640 = vpop.f32.mrb[0].mxu0
  %v641 = vadd.f32 %v84, %v640
  %v642 = vpop.f32.mrb[0].mxu0
  %643 = vmatprep.mubr.f32.mxu0 0.0
  %644 = vmatmul.mubr.f32.gmra.mrb[0].mxu0 %v268
  %v645 = vpop.f32.mrb[0].mxu0
  %v646 = vadd.f32 %v84, %v645
  %v647 = vpop.f32.mrb[0].mxu0
  %648 = vmatprep.mubr.f32.mxu0 0.0
  %649 = vmatmul.mubr.f32.gmra.mrb[0].mxu0 %v271
  %v650 = vpop.f32.mrb[0].mxu0
  %v651 = vadd.f32 %v84, %v650
  %v652 = vpop.f32.mrb[0].mxu0
  %653 = vmatprep.mubr.f32.mxu0 0.0
  %654 = vmatmul.mubr.f32.gmra.mrb[0].mxu0 %v274
  %v655 = vpop.f32.mrb[0].mxu0
  %v656 = vadd.f32 %v84, %v655
  %v657 = vpop.f32.mrb[0].mxu0
  %658 = vmatprep.mubr.f32.mxu0 0.0
  %659 = vmatmul.mubr.f32.gmra.mrb[0].mxu0 %v277
  %v660 = vpop.f32.mrb[0].mxu0
  %v661 = vadd.f32 %v84, %v660
  %v662 = vpop.f32.mrb[0].mxu0
  %663 = vdwg.mxu0
  %vm664 = vcmask 261120
  %665 = vst.msk [vmem:[%s3] sm:$0xff] %vm664, %v346
  %666 = vst.msk [vmem:[%s3 + $0x8] sm:$0xff] %vm664, %v351
  %667 = vst.msk [vmem:[%s3 + $0x10] sm:$0xff] %vm664, %v356
  %668 = vst.msk [vmem:[%s3 + $0x18] sm:$0xff] %vm664, %v361
  %669 = vst.msk [vmem:[%s3 + $0x20] sm:$0xff] %vm664, %v366
  %670 = vst.msk [vmem:[%s3 + $0x28] sm:$0xff] %vm664, %v371
  %671 = vst.msk [vmem:[%s3 + $0x30] sm:$0xff] %vm664, %v376
  %672 = vst.msk [vmem:[%s3 + $0x38] sm:$0xff] %vm664, %v381
  %673 = vst.msk [vmem:[%s3 + $0x40] sm:$0xff] %vm664, %v386
  %674 = vst.msk [vmem:[%s3 + $0x48] sm:$0xff] %vm664, %v391
  %675 = vst.msk [vmem:[%s3 + $0x50] sm:$0xff] %vm664, %v396
  %676 = vst.msk [vmem:[%s3 + $0x58] sm:$0xff] %vm664, %v401
  %677 = vst.msk [vmem:[%s3 + $0x60] sm:$0xff] %vm664, %v406
  %678 = vst.msk [vmem:[%s3 + $0x68] sm:$0xff] %vm664, %v411
  %679 = vst.msk [vmem:[%s3 + $0x70] sm:$0xff] %vm664, %v416
  %680 = vst.msk [vmem:[%s3 + $0x78] sm:$0xff] %vm664, %v421
  %681 = vst.msk [vmem:[%s3 + $0x80] sm:$0xff] %vm664, %v426
  %682 = vst.msk [vmem:[%s3 + $0x88] sm:$0xff] %vm664, %v431
  %683 = vst.msk [vmem:[%s3 + $0x90] sm:$0xff] %vm664, %v436
  %684 = vst.msk [vmem:[%s3 + $0x98] sm:$0xff] %vm664, %v441
  %685 = vst.msk [vmem:[%s3 + $0xa0] sm:$0xff] %vm664, %v446
  %686 = vst.msk [vmem:[%s3 + $0xa8] sm:$0xff] %vm664, %v451
  %687 = vst.msk [vmem:[%s3 + $0xb0] sm:$0xff] %vm664, %v456
  %688 = vst.msk [vmem:[%s3 + $0xb8] sm:$0xff] %vm664, %v461
  %689 = vst.msk [vmem:[%s3 + $0xc0] sm:$0xff] %vm664, %v466
  %690 = vst.msk [vmem:[%s3 + $0xc8] sm:$0xff] %vm664, %v471
  %691 = vst.msk [vmem:[%s3 + $0xd0] sm:$0xff] %vm664, %v476
  %692 = vst.msk [vmem:[%s3 + $0xd8] sm:$0xff] %vm664, %v481
  %693 = vst.msk [vmem:[%s3 + $0xe0] sm:$0xff] %vm664, %v486
  %694 = vst.msk [vmem:[%s3 + $0xe8] sm:$0xff] %vm664, %v491
  %695 = vst.msk [vmem:[%s3 + $0xf0] sm:$0xff] %vm664, %v496
  %696 = vst.msk [vmem:[%s3 + $0xf8] sm:$0xff] %vm664, %v501
  %697 = vst.msk [vmem:[%s3 + $0x100] sm:$0xff] %vm664, %v506
  %698 = vst.msk [vmem:[%s3 + $0x108] sm:$0xff] %vm664, %v511
  %699 = vst.msk [vmem:[%s3 + $0x110] sm:$0xff] %vm664, %v516
  %700 = vst.msk [vmem:[%s3 + $0x118] sm:$0xff] %vm664, %v521
  %701 = vst.msk [vmem:[%s3 + $0x120] sm:$0xff] %vm664, %v526
  %702 = vst.msk [vmem:[%s3 + $0x128] sm:$0xff] %vm664, %v531
  %703 = vst.msk [vmem:[%s3 + $0x130] sm:$0xff] %vm664, %v536
  %704 = vst.msk [vmem:[%s3 + $0x138] sm:$0xff] %vm664, %v541
  %705 = vst.msk [vmem:[%s3 + $0x140] sm:$0xff] %vm664, %v546
  %706 = vst.msk [vmem:[%s3 + $0x148] sm:$0xff] %vm664, %v551
  %707 = vst.msk [vmem:[%s3 + $0x150] sm:$0xff] %vm664, %v556
  %708 = vst.msk [vmem:[%s3 + $0x158] sm:$0xff] %vm664, %v561
  %709 = vst.msk [vmem:[%s3 + $0x160] sm:$0xff] %vm664, %v566
  %710 = vst.msk [vmem:[%s3 + $0x168] sm:$0xff] %vm664, %v571
  %711 = vst.msk [vmem:[%s3 + $0x170] sm:$0xff] %vm664, %v576
  %712 = vst.msk [vmem:[%s3 + $0x178] sm:$0xff] %vm664, %v581
  %713 = vst.msk [vmem:[%s3 + $0x180] sm:$0xff] %vm664, %v586
  %714 = vst.msk [vmem:[%s3 + $0x188] sm:$0xff] %vm664, %v591
  %715 = vst.msk [vmem:[%s3 + $0x190] sm:$0xff] %vm664, %v596
  %716 = vst.msk [vmem:[%s3 + $0x198] sm:$0xff] %vm664, %v601
  %717 = vst.msk [vmem:[%s3 + $0x1a0] sm:$0xff] %vm664, %v606
  %718 = vst.msk [vmem:[%s3 + $0x1a8] sm:$0xff] %vm664, %v611
  %719 = vst.msk [vmem:[%s3 + $0x1b0] sm:$0xff] %vm664, %v616
  %720 = vst.msk [vmem:[%s3 + $0x1b8] sm:$0xff] %vm664, %v621
  %721 = vst.msk [vmem:[%s3 + $0x1c0] sm:$0xff] %vm664, %v626
  %722 = vst.msk [vmem:[%s3 + $0x1c8] sm:$0xff] %vm664, %v631
  %723 = vst.msk [vmem:[%s3 + $0x1d0] sm:$0xff] %vm664, %v636
  %724 = vst.msk [vmem:[%s3 + $0x1d8] sm:$0xff] %vm664, %v641
  %725 = vst.msk [vmem:[%s3 + $0x1e0] sm:$0xff] %vm664, %v646
  %726 = vst.msk [vmem:[%s3 + $0x1e8] sm:$0xff] %vm664, %v651
  %727 = vst.msk [vmem:[%s3 + $0x1f0] sm:$0xff] %vm664, %v656
  %728 = vst.msk [vmem:[%s3 + $0x1f8] sm:$0xff] %vm664, %v661
  // Predicated region
  $region14: #{tpu_custom_call.1} parent=0 // pred_check
    _
  $region15: #{tpu_custom_call.1} parent=0 // pred_check_branch
    %730 = sbr.rel (0) target = $region17
  $region16: #{tpu_custom_call.1} parent=0 // pred_region
    _
  $region17: #{tpu_custom_call.1} parent=0 // pred_fallthru
    _
  // Predicated region
  $region18: #{tpu_custom_call.1} parent=0 // pred_check
    _
  $region19: #{tpu_custom_call.1} parent=0 // pred_check_branch
    %732 = sbr.rel (0) target = $region21
  $region20: #{tpu_custom_call.1} parent=0 // pred_region
    _
  $region21: #{tpu_custom_call.1} parent=0 // pred_fallthru
    _

</llo_original>
